<compile_context>
chip_gen: v5e
topology: v5e:2x2
jax: 0.10.0
libtpu: 0.0.40
codegen_flags: <defaults>
</compile_context>

<pallas_src>
import functools

import jax
import jax.numpy as jnp
from jax.experimental import pallas as pl
from jax.experimental.pallas import tpu as pltpu


def _round_up(v, m):
    return (v + m - 1) // m * m


def _lora_kernel(scaling):
    def kernel(x_ref, w_ref, b_ref, a_ref, bm_ref, out_ref, acc_ref, xa_ref):
        k = pl.program_id(2)
        nk = pl.num_programs(2)

        @pl.when(k == 0)
        def _init():
            acc_ref[...] = jnp.zeros_like(acc_ref)
            xa_ref[...] = jnp.zeros_like(xa_ref)

        x = x_ref[...]                                              # (tm, tk)
        # Main (frozen) path: accumulate x @ W_tile in f32.
        acc_ref[...] += jnp.dot(x, w_ref[...],
                                preferred_element_type=jnp.float32)
        # LoRA first matmul: accumulate xa = x @ A_tile (tiny R columns).
        xa_ref[...] += jnp.dot(x, a_ref[...],
                               preferred_element_type=jnp.float32)

        @pl.when(k == nk - 1)
        def _finalize():
            # Scale the small (tm, R) intermediate instead of the (tm, N)
            # product, then do the second LoRA matmul on the MXU.
            scaled_xa = (xa_ref[...] * scaling).astype(bm_ref.dtype)
            lora = jnp.dot(scaled_xa, bm_ref[...],
                           preferred_element_type=jnp.float32)
            # Epilogue kept in f32 (bias broadcast + add), cast once on store.
            out_ref[...] = (acc_ref[...] + b_ref[...] + lora).astype(out_ref.dtype)

    return kernel


def lora_forward(x, w_orig, bias, lora_a, lora_b, alpha, rank, *,
                 tm=256, tn=256, tk=512, compute_dtype=None,
                 vmem_limit_bytes=48 * 1024 * 1024):
    """Fused LoRA forward.

    x:       (..., K)            input
    w_orig:  (N, K)              frozen nn.Linear weight (PyTorch layout)
    bias:    (N,) or None        frozen nn.Linear bias
    lora_a:  (R, K)              lora_A.weight
    lora_b:  (N, R)              lora_B.weight
    compute_dtype: e.g. jnp.bfloat16 to stream weights / activations in bf16
                   (f32 accumulation is kept either way).
    Returns (..., N) = x @ W^T + b + (alpha/rank) * (x @ A^T) @ B^T
    """
    orig_shape = x.shape
    K = orig_shape[-1]
    N, K_w = w_orig.shape
    R = lora_a.shape[0]
    assert K_w == K and lora_a.shape[1] == K and lora_b.shape == (N, R)
    if bias is None:
        bias = jnp.zeros((N,), jnp.float32)

    out_dtype = x.dtype
    scaling = float(alpha) / float(rank)
    mxu_dtype = compute_dtype if compute_dtype is not None else x.dtype

    x2 = x.reshape(-1, K)
    M = x2.shape[0]

    # ---- tile sizes (respect the (8,128)/bf16-(16,128) tiling rules) -------
    # M tile: second-to-last dim -> multiple of 16 sublanes (covers bf16) or full.
    tm_eff = min(tm, _round_up(M, 16))
    M_pad = _round_up(M, tm_eff)
    # N tile: last dim of W / bias / B / out blocks -> multiple of 128 or full.
    if N <= tn:
        tn_eff, N_pad = N, N
    else:
        tn_eff = _round_up(tn, 128)
        N_pad = _round_up(N, tn_eff)
    # K tile: last dim of the x block -> multiple of 128 or full.
    if K <= tk:
        tk_eff, K_pad = K, K
    else:
        tk_eff = _round_up(tk, 128)
        K_pad = _round_up(K, tk_eff)

    # ---- operand prep: transpose to (M,K)@(K,N) layout, cast, zero-pad -----
    w_t = jnp.transpose(w_orig).astype(mxu_dtype)        # (K, N)
    a_t = jnp.transpose(lora_a).astype(mxu_dtype)        # (K, R)
    b_t = jnp.transpose(lora_b).astype(mxu_dtype)        # (R, N)
    bias2 = bias.reshape(1, N).astype(jnp.float32)       # epilogue stays f32
    x2 = x2.astype(mxu_dtype)

    if M_pad != M or K_pad != K:
        x2 = jnp.pad(x2, ((0, M_pad - M), (0, K_pad - K)))
    if K_pad != K or N_pad != N:
        w_t = jnp.pad(w_t, ((0, K_pad - K), (0, N_pad - N)))
    if K_pad != K:
        a_t = jnp.pad(a_t, ((0, K_pad - K), (0, 0)))
    if N_pad != N:
        b_t = jnp.pad(b_t, ((0, 0), (0, N_pad - N)))
        bias2 = jnp.pad(bias2, ((0, 0), (0, N_pad - N)))

    grid = (M_pad // tm_eff, N_pad // tn_eff, K_pad // tk_eff)

    itemsize = jnp.dtype(mxu_dtype).itemsize
    cost = pl.CostEstimate(
        flops=int(2 * M * K * N + 2 * M * K * R + 2 * M * R * N),
        transcendentals=0,
        bytes_accessed=int(
            (M * K + K * N + K * R + R * N) * itemsize
            + N * 4
            + M * N * jnp.dtype(out_dtype).itemsize),
    )

    out = pl.pallas_call(
        _lora_kernel(scaling),
        out_shape=jax.ShapeDtypeStruct((M_pad, N_pad), out_dtype),
        grid_spec=pltpu.PrefetchScalarGridSpec(
            num_scalar_prefetch=0,
            grid=grid,
            in_specs=[
                pl.BlockSpec((tm_eff, tk_eff), lambda i, j, k: (i, k)),  # x
                pl.BlockSpec((tk_eff, tn_eff), lambda i, j, k: (k, j)),  # W^T
                pl.BlockSpec((1, tn_eff),      lambda i, j, k: (0, j)),  # bias
                pl.BlockSpec((tk_eff, R),      lambda i, j, k: (k, 0)),  # A^T
                pl.BlockSpec((R, tn_eff),      lambda i, j, k: (0, j)),  # B^T
            ],
            out_specs=pl.BlockSpec((tm_eff, tn_eff), lambda i, j, k: (i, j)),
            scratch_shapes=[
                pltpu.VMEM((tm_eff, tn_eff), jnp.float32),   # main-path acc
                pltpu.VMEM((tm_eff, R), jnp.float32),        # xa = x @ A acc
            ],
        ),
        compiler_params=pltpu.CompilerParams(
            dimension_semantics=("parallel", "parallel", "arbitrary"),
            vmem_limit_bytes=vmem_limit_bytes,
        ),
        cost_estimate=cost,
    )(x2, w_t, bias2, a_t, b_t)

    out = out[:M, :N]
    return out.reshape(*orig_shape[:-1], N)


def _lora_ref(x, w_orig, bias, lora_a, lora_b, alpha, rank):
    """Pure-JAX reference matching the PyTorch module (full precision matmuls)."""
    hp = jax.lax.Precision.HIGHEST
    orig = jnp.einsum("...k,nk->...n", x, w_orig, precision=hp) + bias
    xa = jnp.einsum("...k,rk->...r", x, lora_a, precision=hp)
    lora = jnp.einsum("...r,nr->...n", xa, lora_b, precision=hp)
    return orig + (alpha / rank) * lora


if __name__ == "__main__":
    key = jax.random.PRNGKey(0)

    # ---- Case 1: small module-like shapes, f32, single-tile grid -----------
    batch, seq, in_features, out_features, rank = 2, 8, 32, 32, 4
    alpha = 16.0
    kx, kw, kb, ka, kbm, key = jax.random.split(key, 6)

    x = jax.random.normal(kx, (batch, seq, in_features), jnp.float32)
    w_orig = jax.random.normal(kw, (out_features, in_features), jnp.float32) * 0.05
    b_orig = jax.random.normal(kb, (out_features,), jnp.float32) * 0.05
    bound_a = 1.0 / (in_features ** 0.5)
    lora_A_w = jax.random.uniform(ka, (rank, in_features), jnp.float32,
                                  minval=-bound_a, maxval=bound_a)
    # lora_B is zero-initialized in the module; use small randoms so the LoRA
    # path is actually exercised numerically.
    lora_B_w = jax.random.normal(kbm, (out_features, rank), jnp.float32) * 0.1

    ref = _lora_ref(x, w_orig, b_orig, lora_A_w, lora_B_w, alpha, rank)
    out = lora_forward(x, w_orig, b_orig, lora_A_w, lora_B_w, alpha, rank)
    out = jax.block_until_ready(out)
    assert out.shape == (batch, seq, out_features)
    assert jnp.allclose(out, ref, atol=1e-4, rtol=1e-4), "f32 small-case mismatch"

    # ---- Case 2: non-tile-aligned M/N/K, exercises N/K tiling + padding ----
    b2, s2, K2, N2, R2 = 5, 8, 160, 320, 8          # M=40, all need padding
    kx2, kw2, kb2, ka2, kbm2, key = jax.random.split(key, 6)
    x2 = jax.random.normal(kx2, (b2, s2, K2), jnp.float32)
    w2 = jax.random.normal(kw2, (N2, K2), jnp.float32) * 0.05
    bias2 = jax.random.normal(kb2, (N2,), jnp.float32) * 0.05
    a2 = jax.random.uniform(ka2, (R2, K2), jnp.float32,
                            minval=-1.0 / K2 ** 0.5, maxval=1.0 / K2 ** 0.5)
    bm2 = jax.random.normal(kbm2, (N2, R2), jnp.float32) * 0.1

    ref2 = _lora_ref(x2, w2, bias2, a2, bm2, alpha, R2)
    out2 = lora_forward(x2, w2, bias2, a2, bm2, alpha, R2,
                        tm=32, tn=128, tk=128)       # force a (2,3,2) grid
    out2 = jax.block_until_ready(out2)
    assert out2.shape == (b2, s2, N2)
    assert jnp.allclose(out2, ref2, atol=1e-3, rtol=1e-3), "tiled-case mismatch"

    # ---- Case 3: bf16 weight/activation streaming (v6e/v7x fast path) ------
    out3 = lora_forward(x, w_orig, b_orig, lora_A_w, lora_B_w, alpha, rank,
                        compute_dtype=jnp.bfloat16)
    out3 = jax.block_until_ready(out3)
    assert out3.shape == (batch, seq, out_features)
    assert jnp.allclose(out3, ref, atol=5e-2, rtol=5e-2), "bf16-case mismatch"

    print("KERNEL_OK")
</pallas_src>

<mosaic_0001>
module attributes {stable_mosaic.version = 11 : i64} {
  func.func @kernel(%arg0: i32, %arg1: i32, %arg2: i32, %arg3: memref<16x32xf32, #tpu.memory_space<vmem>>, %arg4: memref<32x32xf32, #tpu.memory_space<vmem>>, %arg5: memref<1x32xf32, #tpu.memory_space<vmem>>, %arg6: memref<32x4xf32, #tpu.memory_space<vmem>>, %arg7: memref<4x32xf32, #tpu.memory_space<vmem>>, %arg8: memref<16x32xf32, #tpu.memory_space<vmem>>, %arg9: memref<16x32xf32, #tpu.memory_space<vmem>>, %arg10: memref<16x4xf32, #tpu.memory_space<vmem>>) attributes {dimension_semantics = [#tpu.dimension_semantics<parallel>, #tpu.dimension_semantics<parallel>, #tpu.dimension_semantics<arbitrary>], iteration_bounds = array<i64: 1, 1, 1>, scalar_prefetch = 0 : i64, scratch_operands = 2 : i64, tpu.core_type = #tpu.core_type<tc>, window_params = [{transform_indices = @transform_0, window_bounds = array<i64: 16, 32>}, {transform_indices = @transform_1, window_bounds = array<i64: 32, 32>}, {transform_indices = @transform_2, window_bounds = array<i64: 1, 32>}, {transform_indices = @transform_3, window_bounds = array<i64: 32, 4>}, {transform_indices = @transform_4, window_bounds = array<i64: 4, 32>}, {transform_indices = @transform_5, window_bounds = array<i64: 16, 32>}]} {
    %c0_i32 = arith.constant 0 : i32
    %0 = arith.cmpi eq, %arg2, %c0_i32 : i32
    %1 = arith.extui %0 : i1 to i32
    %c0_i32_0 = arith.constant 0 : i32
    %2 = arith.cmpi ne, %1, %c0_i32_0 : i32
    scf.if %2 {
      %cst_17 = arith.constant 0.000000e+00 : f32
      %17 = vector.broadcast %cst_17 : f32 to vector<16x32xf32>
      %c0_18 = arith.constant 0 : index
      %c0_19 = arith.constant 0 : index
      %18 = vector.load %arg9[%c0_18, %c0_19] : memref<16x32xf32, #tpu.memory_space<vmem>>, vector<16x32xf32>
      tpu.vector_store %arg9[%c0_18, %c0_19], %17 {strides = array<i32>} : memref<16x32xf32, #tpu.memory_space<vmem>>, vector<16x32xf32>,
      %cst_20 = arith.constant 0.000000e+00 : f32
      %19 = vector.broadcast %cst_20 : f32 to vector<16x4xf32>
      %c0_21 = arith.constant 0 : index
      %c0_22 = arith.constant 0 : index
      %20 = vector.load %arg10[%c0_21, %c0_22] : memref<16x4xf32, #tpu.memory_space<vmem>>, vector<16x4xf32>
      tpu.vector_store %arg10[%c0_21, %c0_22], %19 {strides = array<i32>} : memref<16x4xf32, #tpu.memory_space<vmem>>, vector<16x4xf32>,
    } else {
    }
    %c0 = arith.constant 0 : index
    %c0_1 = arith.constant 0 : index
    %3 = vector.load %arg3[%c0, %c0_1] : memref<16x32xf32, #tpu.memory_space<vmem>>, vector<16x32xf32>
    %c0_2 = arith.constant 0 : index
    %c0_3 = arith.constant 0 : index
    %4 = vector.load %arg9[%c0_2, %c0_3] : memref<16x32xf32, #tpu.memory_space<vmem>>, vector<16x32xf32>
    %c0_4 = arith.constant 0 : index
    %c0_5 = arith.constant 0 : index
    %5 = vector.load %arg4[%c0_4, %c0_5] : memref<32x32xf32, #tpu.memory_space<vmem>>, vector<32x32xf32>
    %cst = arith.constant dense<0.000000e+00> : vector<16x32xf32>
    %6 = tpu.matmul %3, %5, %cst {dimension_numbers = #tpu.dot_dimension_numbers<[1], [0], [0], [1], [0, 0, 1, 1], [], []>} : vector<16x32xf32>, vector<32x32xf32>, vector<16x32xf32> -> vector<16x32xf32>
    %7 = arith.addf %4, %6 : vector<16x32xf32>
    %c0_6 = arith.constant 0 : index
    %c0_7 = arith.constant 0 : index
    %8 = vector.load %arg9[%c0_6, %c0_7] : memref<16x32xf32, #tpu.memory_space<vmem>>, vector<16x32xf32>
    tpu.vector_store %arg9[%c0_6, %c0_7], %7 {strides = array<i32>} : memref<16x32xf32, #tpu.memory_space<vmem>>, vector<16x32xf32>,
    %c0_8 = arith.constant 0 : index
    %c0_9 = arith.constant 0 : index
    %9 = vector.load %arg10[%c0_8, %c0_9] : memref<16x4xf32, #tpu.memory_space<vmem>>, vector<16x4xf32>
    %c0_10 = arith.constant 0 : index
    %c0_11 = arith.constant 0 : index
    %10 = vector.load %arg6[%c0_10, %c0_11] : memref<32x4xf32, #tpu.memory_space<vmem>>, vector<32x4xf32>
    %cst_12 = arith.constant dense<0.000000e+00> : vector<16x4xf32>
    %11 = tpu.matmul %3, %10, %cst_12 {dimension_numbers = #tpu.dot_dimension_numbers<[1], [0], [0], [1], [0, 0, 1, 1], [], []>} : vector<16x32xf32>, vector<32x4xf32>, vector<16x4xf32> -> vector<16x4xf32>
    %12 = arith.addf %9, %11 : vector<16x4xf32>
    %c0_13 = arith.constant 0 : index
    %c0_14 = arith.constant 0 : index
    %13 = vector.load %arg10[%c0_13, %c0_14] : memref<16x4xf32, #tpu.memory_space<vmem>>, vector<16x4xf32>
    tpu.vector_store %arg10[%c0_13, %c0_14], %12 {strides = array<i32>} : memref<16x4xf32, #tpu.memory_space<vmem>>, vector<16x4xf32>,
    %c0_i32_15 = arith.constant 0 : i32
    %14 = arith.cmpi eq, %arg2, %c0_i32_15 : i32
    %15 = arith.extui %14 : i1 to i32
    %c0_i32_16 = arith.constant 0 : i32
    %16 = arith.cmpi ne, %15, %c0_i32_16 : i32
    scf.if %16 {
      %c0_17 = arith.constant 0 : index
      %c0_18 = arith.constant 0 : index
      %17 = vector.load %arg10[%c0_17, %c0_18] : memref<16x4xf32, #tpu.memory_space<vmem>>, vector<16x4xf32>
      %cst_19 = arith.constant 4.000000e+00 : f32
      %18 = vector.broadcast %cst_19 : f32 to vector<16x4xf32>
      %19 = arith.mulf %17, %18 : vector<16x4xf32>
      %c0_20 = arith.constant 0 : index
      %c0_21 = arith.constant 0 : index
      %20 = vector.load %arg7[%c0_20, %c0_21] : memref<4x32xf32, #tpu.memory_space<vmem>>, vector<4x32xf32>
      %cst_22 = arith.constant dense<0.000000e+00> : vector<16x32xf32>
      %21 = tpu.matmul %19, %20, %cst_22 {dimension_numbers = #tpu.dot_dimension_numbers<[1], [0], [0], [1], [0, 0, 1, 1], [], []>} : vector<16x4xf32>, vector<4x32xf32>, vector<16x32xf32> -> vector<16x32xf32>
      %c0_23 = arith.constant 0 : index
      %c0_24 = arith.constant 0 : index
      %22 = vector.load %arg9[%c0_23, %c0_24] : memref<16x32xf32, #tpu.memory_space<vmem>>, vector<16x32xf32>
      %c0_25 = arith.constant 0 : index
      %c0_26 = arith.constant 0 : index
      %23 = vector.load %arg5[%c0_25, %c0_26] : memref<1x32xf32, #tpu.memory_space<vmem>>, vector<1x32xf32>
      %24 = vector.broadcast %23 : vector<1x32xf32> to vector<16x32xf32>
      %25 = arith.addf %22, %24 : vector<16x32xf32>
      %26 = arith.addf %25, %21 : vector<16x32xf32>
      %c0_27 = arith.constant 0 : index
      %c0_28 = arith.constant 0 : index
      %27 = vector.load %arg8[%c0_27, %c0_28] : memref<16x32xf32, #tpu.memory_space<vmem>>, vector<16x32xf32>
      tpu.vector_store %arg8[%c0_27, %c0_28], %26 {strides = array<i32>} : memref<16x32xf32, #tpu.memory_space<vmem>>, vector<16x32xf32>,
    } else {
    }
    return
  }
  func.func @transform_0(%arg0: i32, %arg1: i32, %arg2: i32) -> (i32, i32) {
    %c0_i32 = arith.constant 0 : i32
    return %arg0, %arg2 : i32, i32
  }
  func.func @transform_1(%arg0: i32, %arg1: i32, %arg2: i32) -> (i32, i32) {
    %c0_i32 = arith.constant 0 : i32
    return %arg2, %arg1 : i32, i32
  }
  func.func @transform_2(%arg0: i32, %arg1: i32, %arg2: i32) -> (i32, i32) {
    %c0_i32 = arith.constant 0 : i32
    %c0_i32_0 = arith.constant 0 : i32
    return %c0_i32, %arg1 : i32, i32
  }
  func.func @transform_3(%arg0: i32, %arg1: i32, %arg2: i32) -> (i32, i32) {
    %c0_i32 = arith.constant 0 : i32
    %c0_i32_0 = arith.constant 0 : i32
    return %arg2, %c0_i32 : i32, i32
  }
  func.func @transform_4(%arg0: i32, %arg1: i32, %arg2: i32) -> (i32, i32) {
    %c0_i32 = arith.constant 0 : i32
    %c0_i32_0 = arith.constant 0 : i32
    return %c0_i32, %arg1 : i32, i32
  }
  func.func @transform_5(%arg0: i32, %arg1: i32, %arg2: i32) -> (i32, i32) {
    %c0_i32 = arith.constant 0 : i32
    return %arg0, %arg1 : i32, i32
  }
}

</mosaic_0001>

<llo_original>
// kernel: tpu_custom_call.1
$region0: #{tpu_custom_call.1}
  #allocation0 [shape = 'u32[]', space=smem, size = 0x4, offset = 0x4, fixed_abs, tag = 'smem constant byte address 0x4 - core index']
  #allocation1 [shape = 'u32[72,128]{1,0:T(1,128)}', space=vmem, size = 0x9000, scoped, tag = 'internal scratch']
  #allocation2 [shape = 'f32[16,32]{1,0:T(8,128)}', space=vmem, size = 0x2000, scoped, tag = 'scratch operand']
  #allocation3 [shape = 'f32[16,4]{1,0:T(8,128)}', space=vmem, size = 0x2000, scoped, tag = 'scratch operand']
  %s0 = inlined_call_operand.hbm [shape: f32[16,32], index: 0, kind: input, shape index: {}]
  %s1 = inlined_call_operand.vmem [shape: f32[32,32], index: 1, kind: input, shape index: {}]
  %s2 = inlined_call_operand.vmem [shape: f32[1,32], index: 2, kind: input, shape index: {}]
  %s3 = inlined_call_operand.vmem [shape: f32[32,4], index: 3, kind: input, shape index: {}]
  %s4 = inlined_call_operand.vmem [shape: f32[4,32], index: 4, kind: input, shape index: {}]
  %s5 = inlined_call_operand.hbm [shape: f32[16,32], index: 5, kind: output, shape index: {}]
  %s6 = sld [smem:[#allocation0]]
  $region42: #{tpu_custom_call.1} parent=0
    _
  %s8 = ssub.s32 1, %s6
  %s9 = scalar_select 0, %s8, %s6
  $region1: #{tpu_custom_call.1} parent=0
    #allocation4 [shape = 'u8[8192]{0}', space=vmem, size = 0x2000, scoped, tag = 'input window, operand 0, single buffered']
    #allocation5 [shape = 's32[1]{0}', space=sflag, size = 0x4, scoped, tag = 'scoped memory for tpu_custom_call.1']
    #allocation6 [shape = 's32[1]{0}', space=sflag, size = 0x4, scoped, tag = 'scoped memory for tpu_custom_call.1']
    #allocation7 [shape = 'u8[8192]{0}', space=vmem, size = 0x2000, scoped, tag = 'output window, operand 0, single buffered']
    %10 = vsyncpa [#allocation5], 0
    %11 = vsyncpa [#allocation6], 0
    // Predicated region
    $region2: #{tpu_custom_call.1} parent=1 // pred_check
      _
    $region3: #{tpu_custom_call.1} parent=1 // pred_check_branch
      %13 = sbr.rel (0) target = $region5
    $region4: #{tpu_custom_call.1} parent=1 // pred_region
      %15 = vsyncadd [#allocation5], 0
      %s16 = sshll.u32 %s0, 4
      %s17 = int_to_ptr.hbm [resolvable:$true] %s16
      %s18 = sshll.u32 [#allocation4], 4
      %s19 = int_to_ptr.vmem [resolvable:$true] %s18
      %24 = dma.hbm_to_vmem [thread:$0]  %s17, 256, %s19, [#allocation5], 128, 128, 8
    $region5: #{tpu_custom_call.1} parent=1 // pred_fallthru
      _
    // Predicated region
    $region6: #{tpu_custom_call.1} parent=1 // pred_check
      _
    $region7: #{tpu_custom_call.1} parent=1 // pred_check_branch
      %26 = sbr.rel (0) target = $region9
    $region8: #{tpu_custom_call.1} parent=1 // pred_region
      _
    $region9: #{tpu_custom_call.1} parent=1 // pred_fallthru
      _
    // Predicated region
    $region10: #{tpu_custom_call.1} parent=1 // pred_check
      _
    $region11: #{tpu_custom_call.1} parent=1 // pred_check_branch
      %28 = sbr.rel (0) target = $region13
    $region12: #{tpu_custom_call.1} parent=1 // pred_region
      _
    $region13: #{tpu_custom_call.1} parent=1 // pred_fallthru
      _
    // Predicated region
    $region14: #{tpu_custom_call.1} parent=1 // pred_check
      _
    $region15: #{tpu_custom_call.1} parent=1 // pred_check_branch
      %30 = sbr.rel (0) target = $region17
    $region16: #{tpu_custom_call.1} parent=1 // pred_region
      _
    $region17: #{tpu_custom_call.1} parent=1 // pred_fallthru
      _
    // Predicated region
    $region18: #{tpu_custom_call.1} parent=1 // pred_check
      _
    $region19: #{tpu_custom_call.1} parent=1 // pred_check_branch
      %32 = sbr.rel (0) target = $region21
    $region20: #{tpu_custom_call.1} parent=1 // pred_region
      _
    $region21: #{tpu_custom_call.1} parent=1 // pred_fallthru
      _
    // Predicated region
    $region22: #{tpu_custom_call.1} parent=1 // pred_check
      _
    $region23: #{tpu_custom_call.1} parent=1 // pred_check_branch
      %34 = sbr.rel (0) target = $region25
    $region24: #{tpu_custom_call.1} parent=1 // pred_region
      %36 = dma.done [#allocation5], 256
    $region25: #{tpu_custom_call.1} parent=1 // pred_fallthru
      _
    %p37 = scmp.eq.s32.totalorder 0, 0
    // Predicated region
    $region26: #{tpu_custom_call.1} parent=1 // pred_check
      %p38 = pneg %p37
    $region27: #{tpu_custom_call.1} parent=1 // pred_check_branch
      %40 = sbr.rel (%p38) target = $region29
    $region28: #{tpu_custom_call.1} parent=1 // pred_region
      %vm41 = vcmask 261120
      %42 = vst.msk [vmem:[#allocation2] sm:$0xff] %vm41, 0.0
      %43 = vst.msk [vmem:[#allocation2 + $0x8] sm:$0xff] %vm41, 0.0
      %vm44 = vcmask 31744
      %45 = vst.msk [vmem:[#allocation3] sm:$0xff] %vm44, 0.0
      %46 = vst.msk [vmem:[#allocation3 + $0x8] sm:$0xff] %vm44, 0.0
    $region29: #{tpu_custom_call.1} parent=1 // pred_fallthru
      _
    %v47 = vld [vmem:[#allocation4] sm:$0xff]
    %v48 = vld [vmem:[#allocation4 + $0x8] sm:$0xff]
    %v49 = vld [vmem:[#allocation2] sm:$0xff]
    %v50 = vld [vmem:[#allocation2 + $0x8] sm:$0xff]
    %v51 = vld [vmem:[%s1] sm:$0xff]
    %v52 = vld [vmem:[%s1 + $0x8] sm:$0xff]
    %v53 = vld [vmem:[%s1 + $0x10] sm:$0xff]
    %v54 = vld [vmem:[%s1 + $0x18] sm:$0xff]
    %vm55 = vcmask 261120
    %v57 = vsel %vm55, %v47, 0
    %v60 = vsel %vm55, %v48, 0
    %62 = vmatpush.msra.mxu0 0.0
    %63 = vmatpush.msra.mxu0 0.0
    %64 = vmatpush.msra.mxu0 0.0
    %65 = vmatpush.msra.mxu0 0.0
    %66 = vmatpush.msra.mxu0 0.0
    %67 = vmatpush.msra.mxu0 0.0
    %68 = vmatpush.msra.mxu0 0.0
    %69 = vmatpush.msra.mxu0 0.0
    %70 = vmatpush.msra.mxu0 0.0
    %71 = vmatpush.msra.mxu0 0.0
    %72 = vmatpush.msra.mxu0 0.0
    %73 = vmatpush.msra.mxu0 0.0
    %74 = vmatpush.msra.mxu0 %v54
    %75 = vmatpush.msra.mxu0 %v53
    %76 = vmatpush.msra.mxu0 %v52
    %77 = vmatpush.msra.mxu0 %v51
    %78 = vmatmul.f32.gmra.mxu0 %v57
    %v79 = vpop.f32.mrf.mxu0
    %v80 = vadd.f32 0.0, %v79
    %81 = vmatmul.f32.gmra.mxu0 %v60
    %v82 = vpop.f32.mrf.mxu0
    %v83 = vadd.f32 0.0, %v82
    %84 = vdwg.mxu0
    %v85 = vadd.f32 %v49, %v80
    %v86 = vadd.f32 %v50, %v83
    %87 = vst.msk [vmem:[#allocation2] sm:$0xff] %vm55, %v85
    %88 = vst.msk [vmem:[#allocation2 + $0x8] sm:$0xff] %vm55, %v86
    %v89 = vld [vmem:[#allocation3] sm:$0xff]
    %v90 = vld [vmem:[#allocation3 + $0x8] sm:$0xff]
    %v91 = vld [vmem:[%s3] sm:$0xff]
    %v92 = vld [vmem:[%s3 + $0x8] sm:$0xff]
    %v93 = vld [vmem:[%s3 + $0x10] sm:$0xff]
    %v94 = vld [vmem:[%s3 + $0x18] sm:$0xff]
    %95 = vmatpush.msra.mxu0 0.0
    %96 = vmatpush.msra.mxu0 0.0
    %97 = vmatpush.msra.mxu0 0.0
    %98 = vmatpush.msra.mxu0 0.0
    %99 = vmatpush.msra.mxu0 0.0
    %100 = vmatpush.msra.mxu0 0.0
    %101 = vmatpush.msra.mxu0 0.0
    %102 = vmatpush.msra.mxu0 0.0
    %103 = vmatpush.msra.mxu0 0.0
    %104 = vmatpush.msra.mxu0 0.0
    %105 = vmatpush.msra.mxu0 0.0
    %106 = vmatpush.msra.mxu0 0.0
    %107 = vmatpush.msra.mxu0 %v94
    %108 = vmatpush.msra.mxu0 %v93
    %109 = vmatpush.msra.mxu0 %v92
    %110 = vmatpush.msra.mxu0 %v91
    %111 = vmatmul.f32.gmra.mxu0 %v57
    %v112 = vpop.f32.mrf.mxu0
    %v113 = vadd.f32 0.0, %v112
    %114 = vmatmul.f32.gmra.mxu0 %v60
    %v115 = vpop.f32.mrf.mxu0
    %v116 = vadd.f32 0.0, %v115
    %117 = vdwg.mxu0
    %v118 = vadd.f32 %v89, %v113
    %v119 = vadd.f32 %v90, %v116
    %vm120 = vcmask 31744
    %121 = vst.msk [vmem:[#allocation3] sm:$0xff] %vm120, %v118
    %122 = vst.msk [vmem:[#allocation3 + $0x8] sm:$0xff] %vm120, %v119
    // Predicated region
    $region30: #{tpu_custom_call.1} parent=1 // pred_check
      %p123 = pneg %p37
    $region31: #{tpu_custom_call.1} parent=1 // pred_check_branch
      %125 = sbr.rel (%p123) target = $region33
    $region32: #{tpu_custom_call.1} parent=1 // pred_region
      %v126 = vld [vmem:[#allocation3] sm:$0xff]
      %v127 = vld [vmem:[#allocation3 + $0x8] sm:$0xff]
      %v128 = vmul.f32 %v126, 4.0
      %v129 = vmul.f32 %v127, 4.0
      %v130 = vld [vmem:[%s4] sm:$0xf]
      %v132 = vsel %vm120, %v128, 0
      %v135 = vsel %vm120, %v129, 0
      %vm137 = vcmask 1043456
      %v139 = vsel %vm137, %v130, 0
      %141 = vmatpush.msra.mxu0 0.0
      %142 = vmatpush.msra.mxu0 0.0
      %143 = vmatpush.msra.mxu0 0.0
      %144 = vmatpush.msra.mxu0 0.0
      %145 = vmatpush.msra.mxu0 0.0
      %146 = vmatpush.msra.mxu0 0.0
      %147 = vmatpush.msra.mxu0 0.0
      %148 = vmatpush.msra.mxu0 0.0
      %149 = vmatpush.msra.mxu0 0.0
      %150 = vmatpush.msra.mxu0 0.0
      %151 = vmatpush.msra.mxu0 0.0
      %152 = vmatpush.msra.mxu0 0.0
      %153 = vmatpush.msra.mxu0 0.0
      %154 = vmatpush.msra.mxu0 0.0
      %155 = vmatpush.msra.mxu0 0.0
      %156 = vmatpush.msra.mxu0 %v139
      %157 = vmatmul.f32.gmra.mxu0 %v132
      %v158 = vpop.f32.mrf.mxu0
      %v159 = vadd.f32 0.0, %v158
      %160 = vmatmul.f32.gmra.mxu0 %v135
      %v161 = vpop.f32.mrf.mxu0
      %v162 = vadd.f32 0.0, %v161
      %163 = vdwg.mxu0
      %v164 = vld [vmem:[#allocation2] sm:$0xff]
      %v165 = vld [vmem:[#allocation2 + $0x8] sm:$0xff]
      %v166 = vld [vmem:[%s2] sm:$0x1]
      %v168 = vperm.slane %v166, 0
      %v170 = vadd.f32 %v164, %v168
      %v171 = vadd.f32 %v165, %v168
      %v172 = vadd.f32 %v170, %v159
      %v173 = vadd.f32 %v171, %v162
      %174 = vst.msk [vmem:[#allocation7] sm:$0xff] %vm55, %v172
      %175 = vst.msk [vmem:[#allocation7 + $0x8] sm:$0xff] %vm55, %v173
    $region33: #{tpu_custom_call.1} parent=1 // pred_fallthru
      _
    // Predicated region
    $region34: #{tpu_custom_call.1} parent=1 // pred_check
      _
    $region35: #{tpu_custom_call.1} parent=1 // pred_check_branch
      %177 = sbr.rel (0) target = $region37
    $region36: #{tpu_custom_call.1} parent=1 // pred_region
      %179 = vsyncadd [#allocation6], 0
      %s180 = sshll.u32 [#allocation7], 4
      %s181 = int_to_ptr.vmem [resolvable:$true] %s180
      %s182 = sshll.u32 %s5, 4
      %s183 = int_to_ptr.hbm [resolvable:$true] %s182
      %188 = dma.vmem_to_hbm [thread:$0]  %s181, 256, %s183, [#allocation6], 128, 128, 8
    $region37: #{tpu_custom_call.1} parent=1 // pred_fallthru
      _
    // Predicated region
    $region38: #{tpu_custom_call.1} parent=1 // pred_check
      _
    $region39: #{tpu_custom_call.1} parent=1 // pred_check_branch
      %190 = sbr.rel (0) target = $region41
    $region40: #{tpu_custom_call.1} parent=1 // pred_region
      %192 = dma.done [#allocation6], 256
    $region41: #{tpu_custom_call.1} parent=1 // pred_fallthru
      _
    %193 = vsyncpa [#allocation5], 1
    %194 = vsyncpa [#allocation6], 1

</llo_original>
